<compile_context>
chip_gen: v6e
topology: v6e:2x2x1
jax: 0.10.0
libtpu: 0.0.40
codegen_flags: <defaults>
</compile_context>

<pallas_src>
import functools

import jax
import jax.numpy as jnp
from jax.experimental import pallas as pl
from jax.experimental.pallas import tpu as pltpu

INF = 32752.0  # matches the PyTorch module's constant (not actual inf)


def _erf(x):
    # Abramowitz & Stegun 7.1.26 rational approximation (max abs err ~1.5e-7),
    # far below the comparison tolerances used here.
    a1, a2, a3, a4, a5 = 0.254829592, -0.284496736, 1.421413741, -1.453152027, 1.061405429
    p = 0.3275911
    s = jnp.where(x >= 0.0, 1.0, -1.0)
    ax = jnp.abs(x)
    t = 1.0 / (1.0 + p * ax)
    poly = ((((a5 * t + a4) * t + a3) * t + a2) * t + a1) * t
    return s * (1.0 - poly * jnp.exp(-ax * ax))


def _gelu_exact(x):
    # PyTorch nn.GELU() default is the exact (erf-based) GELU.
    return 0.5 * x * (1.0 + _erf(x * 0.7071067811865476))


def genpool_kernel(matmul_dtype, precision, exact_recip,
                   feat_ref, mask_ref, w1_ref, b1_ref, w2_ref, b2_ref, out_ref):
    feat = feat_ref[...]                                # (Bt, S, D) f32
    bt, s, d = feat.shape
    x2d = feat.reshape(bt * s, d)

    # Fused first linear over all heads + GELU   (dropout1 = identity in eval)
    h1 = jnp.dot(x2d.astype(matmul_dtype), w1_ref[...],
                 preferred_element_type=jnp.float32,
                 precision=precision)                   # (Bt*S, H*d_head)
    h1 = h1 + b1_ref[...]                               # (1, H*d_head) broadcast
    h1 = _gelu_exact(h1)

    # Fused second linear (block-diagonal weights)      (dropout2 = identity)
    h2 = jnp.dot(h1.astype(matmul_dtype), w2_ref[...],
                 preferred_element_type=jnp.float32,
                 precision=precision)                   # (Bt*S, D)
    h2 = h2 + b2_ref[...]                               # (1, D) broadcast

    # masked_fill_(mask, -INF), applied once on the fused (Bt, S, D) scores.
    scores = h2.reshape(bt, s, d)
    scores = jnp.where(mask_ref[...] > 0.5, -INF, scores)

    # Softmax over the sequence axis, per batch row and per output channel
    # (softmax_temp = 1, dropout3 = identity).
    mx = jnp.max(scores, axis=1, keepdims=True)
    e = jnp.exp(scores - mx)
    denom = jnp.sum(e, axis=1, keepdims=True)           # (Bt, 1, D)
    if exact_recip:
        inv = 1.0 / denom                               # exact (f32 path)
    else:
        inv = pl.reciprocal(denom, approx=True)         # EUP slot (fast path)
    sm = e * inv

    # torch's transpose(1,2).reshape(-1,S,D) is exactly the column ordering of
    # the fused scores, so the pooling is one dense multiply + reduce over S.
    pooled = jnp.sum(feat * sm, axis=1)                 # (Bt, D)
    out_ref[...] = pooled[:, None, :].astype(out_ref.dtype)  # one dense store


def _pick_batch_tile(B, target):
    """Largest divisor of B that is <= target, preferring >= 2 grid steps so
    both v7x TensorCores get work."""
    cands = [bt for bt in range(1, min(B, target) + 1)
             if B % bt == 0 and B // bt >= 2]
    return max(cands) if cands else B


def genpool_forward(features, mask, w1, b1, w2, b2, *,
                    matmul_dtype=jnp.float32, precision=None, batch_tile=None):
    """features: (B, S, D) f32, mask: (B, S) bool (True == padded position).

    matmul_dtype: MXU operand dtype (f32, or bf16 for the v6e/v7x fast path).
    precision:    optional lax.Precision for the in-kernel dots (None keeps
                  the TPU default bf16-pass contraction for f32 operands).
    """
    B, S, D = features.shape
    H, _, d_head = w1.shape
    d_head_out = w2.shape[-1]
    assert H * d_head_out == D

    # --- one-time parameter re-layout (done at weight-load time in practice) ---
    # First layer: concat heads along the output axis -> (D, H*d_head).
    w1cat = jnp.transpose(w1, (1, 0, 2)).reshape(D, H * d_head)
    b1cat = b1.reshape(1, H * d_head)
    # Second layer: block-diagonal so one matmul covers all heads.
    w2bd = (jnp.eye(H, dtype=w2.dtype)[:, None, :, None] * w2[:, :, None, :])
    w2bd = w2bd.reshape(H * d_head, H * d_head_out)
    b2cat = b2.reshape(1, H * d_head_out)
    # bf16 MXU operands (v6e/v7x): halves weight DMA, doubles matmul rate;
    # accumulation and post-matmul math stay f32.
    w1cat = w1cat.astype(matmul_dtype)
    w2bd = w2bd.astype(matmul_dtype)

    mask_f = mask.astype(jnp.float32).reshape(B, S, 1)

    # Batch tiling: aim for MXU M = Bt*S >= 128 while keeping >= 2 grid steps
    # (v7x has 2 TensorCores).
    if batch_tile is None:
        batch_tile = max(8, pl.cdiv(128, S))
    bt = _pick_batch_tile(B, batch_tile)
    grid = (B // bt,)

    exact_recip = jnp.dtype(matmul_dtype) == jnp.dtype(jnp.float32)
    kernel = functools.partial(genpool_kernel, matmul_dtype, precision,
                               exact_recip)
    out = pl.pallas_call(
        kernel,
        out_shape=jax.ShapeDtypeStruct((B, 1, D), jnp.float32),
        grid_spec=pl.GridSpec(
            grid=grid,
            in_specs=[
                pl.BlockSpec((bt, S, D), lambda b: (b, 0, 0)),    # features
                pl.BlockSpec((bt, S, 1), lambda b: (b, 0, 0)),    # mask
                pl.BlockSpec((D, H * d_head), lambda b: (0, 0)),  # fused w1
                pl.BlockSpec((1, H * d_head), lambda b: (0, 0)),  # fused b1
                pl.BlockSpec((H * d_head, D), lambda b: (0, 0)),  # block-diag w2
                pl.BlockSpec((1, D), lambda b: (0, 0)),           # fused b2
            ],
            out_specs=pl.BlockSpec((bt, 1, D), lambda b: (b, 0, 0)),
        ),
        compiler_params=pltpu.CompilerParams(
            dimension_semantics=("parallel",)),
    )(features, mask_f, w1cat, b1cat, w2bd, b2cat)
    return out.reshape(B, D)


def genpool_reference(features, mask, w1, b1, w2, b2):
    """Pure-JAX reference mirroring the PyTorch forward (eval mode).

    Runs at Precision.HIGHEST so it is a true f32 baseline (the TPU default
    would itself round f32 contractions through bf16 MXU passes).
    """
    hi = jax.lax.Precision.HIGHEST
    B, S, D = features.shape
    x = jnp.einsum('bsd,hdk->bhsk', features, w1, precision=hi) + b1[None, :, None, :]
    x = jax.nn.gelu(x, approximate=False)
    x = jnp.einsum('bhsk,hko->bhso', x, w2, precision=hi) + b2[None, :, None, :]
    x = jnp.where(mask[:, None, :, None], -INF, x)
    sm = jax.nn.softmax(x, axis=2)
    smw = jnp.transpose(sm, (0, 2, 1, 3)).reshape(B, S, D)
    return jnp.sum(features * smw, axis=1)


if __name__ == "__main__":
    # Module config: d_input=32, d_attn=32, n_heads=4, dropout_prob=0.1 (eval).
    B, S, D = 4, 8, 32
    H = 4
    d_attn = 32
    d_head = d_attn // H          # 8
    d_head_out = D // H           # 8

    key = jax.random.PRNGKey(0)
    k1, k2, k3, k4, k5 = jax.random.split(key, 5)
    features = jax.random.normal(k1, (B, S, D), jnp.float32)
    # Deterministic synthetic parameters (module __init__ uses zeros; use small
    # random values so the pooling is non-trivial).
    w1 = 0.1 * jax.random.normal(k2, (H, D, d_head), jnp.float32)
    b1 = 0.1 * jax.random.normal(k3, (H, d_head), jnp.float32)
    w2 = 0.1 * jax.random.normal(k4, (H, d_head, d_head_out), jnp.float32)
    b2 = 0.1 * jax.random.normal(k5, (H, d_head_out), jnp.float32)

    lengths = jnp.array([S, 5, 3, 7], jnp.int32)
    mask = jnp.arange(S)[None, :] >= lengths[:, None]   # True == padding position

    ref = genpool_reference(features, mask, w1, b1, w2, b2)

    # f32-operand path.  Tolerance is sized for the TPU's DEFAULT matmul
    # precision (f32 operands are contracted in bf16 MXU passes), which the
    # kernel keeps intentionally for throughput; the reference runs at HIGHEST.
    out = genpool_forward(features, mask, w1, b1, w2, b2,
                          matmul_dtype=jnp.float32)
    out = jax.block_until_ready(out)
    assert out.shape == (B, D)
    assert jnp.allclose(out, ref, atol=1e-2, rtol=1e-2), (out, ref)

    # bf16 MXU fast path (v6e/v7x): looser tolerance for bf16 operands.
    out_bf16 = genpool_forward(features, mask, w1, b1, w2, b2,
                               matmul_dtype=jnp.bfloat16)
    out_bf16 = jax.block_until_ready(out_bf16)
    assert jnp.allclose(out_bf16, ref, atol=3e-2, rtol=3e-2), (out_bf16, ref)

    print("KERNEL_OK")
</pallas_src>

<mosaic_0001>
module attributes {stable_mosaic.version = 11 : i64} {
  func.func @genpool_kernel(%arg0: i32, %arg1: memref<2x8x32xf32, #tpu.memory_space<vmem>>, %arg2: memref<2x8x1xf32, #tpu.memory_space<vmem>>, %arg3: memref<32x32xf32, #tpu.memory_space<vmem>>, %arg4: memref<1x32xf32, #tpu.memory_space<vmem>>, %arg5: memref<32x32xf32, #tpu.memory_space<vmem>>, %arg6: memref<1x32xf32, #tpu.memory_space<vmem>>, %arg7: memref<2x1x32xf32, #tpu.memory_space<vmem>>) attributes {dimension_semantics = [#tpu.dimension_semantics<parallel>], iteration_bounds = array<i64: 2>, scalar_prefetch = 0 : i64, scratch_operands = 0 : i64, tpu.core_type = #tpu.core_type<tc>, window_params = [{transform_indices = @transform_0, window_bounds = array<i64: 2, 8, 32>}, {transform_indices = @transform_1, window_bounds = array<i64: 2, 8, 1>}, {pipeline_mode = #tpu.pipeline_mode<synchronous>, transform_indices = @transform_2, window_bounds = array<i64: 32, 32>}, {pipeline_mode = #tpu.pipeline_mode<synchronous>, transform_indices = @transform_3, window_bounds = array<i64: 1, 32>}, {pipeline_mode = #tpu.pipeline_mode<synchronous>, transform_indices = @transform_4, window_bounds = array<i64: 32, 32>}, {pipeline_mode = #tpu.pipeline_mode<synchronous>, transform_indices = @transform_5, window_bounds = array<i64: 1, 32>}, {transform_indices = @transform_6, window_bounds = array<i64: 2, 1, 32>}]} {
    %c0 = arith.constant 0 : index
    %c0_0 = arith.constant 0 : index
    %c0_1 = arith.constant 0 : index
    %0 = vector.load %arg1[%c0, %c0_0, %c0_1] : memref<2x8x32xf32, #tpu.memory_space<vmem>>, vector<2x8x32xf32>
    %1 = vector.shape_cast %0 : vector<2x8x32xf32> to vector<16x32xf32>
    %c0_2 = arith.constant 0 : index
    %c0_3 = arith.constant 0 : index
    %2 = vector.load %arg3[%c0_2, %c0_3] : memref<32x32xf32, #tpu.memory_space<vmem>>, vector<32x32xf32>
    %cst = arith.constant dense<0.000000e+00> : vector<16x32xf32>
    %3 = tpu.matmul %1, %2, %cst {dimension_numbers = #tpu.dot_dimension_numbers<[1], [0], [0], [1], [0, 0, 1, 1], [], []>} : vector<16x32xf32>, vector<32x32xf32>, vector<16x32xf32> -> vector<16x32xf32>
    %c0_4 = arith.constant 0 : index
    %c0_5 = arith.constant 0 : index
    %4 = vector.load %arg4[%c0_4, %c0_5] : memref<1x32xf32, #tpu.memory_space<vmem>>, vector<1x32xf32>
    %5 = vector.broadcast %4 : vector<1x32xf32> to vector<16x32xf32>
    %6 = arith.addf %3, %5 : vector<16x32xf32>
    %cst_6 = arith.constant 5.000000e-01 : f32
    %7 = vector.broadcast %cst_6 : f32 to vector<16x32xf32>
    %8 = arith.mulf %7, %6 : vector<16x32xf32>
    %cst_7 = arith.constant 0.707106769 : f32
    %9 = vector.broadcast %cst_7 : f32 to vector<16x32xf32>
    %10 = arith.mulf %6, %9 : vector<16x32xf32>
    %cst_8 = arith.constant 0.000000e+00 : f32
    %11 = vector.broadcast %cst_8 : f32 to vector<16x32xf32>
    %12 = arith.cmpf oge, %10, %11 : vector<16x32xf32>
    %cst_9 = arith.constant 1.000000e+00 : f32
    %cst_10 = arith.constant -1.000000e+00 : f32
    %13 = vector.broadcast %cst_9 : f32 to vector<16x32xf32>
    %14 = vector.broadcast %cst_10 : f32 to vector<16x32xf32>
    %15 = arith.select %12, %13, %14 : vector<16x32xi1>, vector<16x32xf32>
    %16 = math.absf %10 : vector<16x32xf32>
    %cst_11 = arith.constant 0.327591091 : f32
    %17 = vector.broadcast %cst_11 : f32 to vector<16x32xf32>
    %18 = arith.mulf %17, %16 : vector<16x32xf32>
    %cst_12 = arith.constant 1.000000e+00 : f32
    %19 = vector.broadcast %cst_12 : f32 to vector<16x32xf32>
    %20 = arith.addf %19, %18 : vector<16x32xf32>
    %cst_13 = arith.constant 1.000000e+00 : f32
    %21 = vector.broadcast %cst_13 : f32 to vector<16x32xf32>
    %22 = arith.divf %21, %20 : vector<16x32xf32>
    %cst_14 = arith.constant 1.06140542 : f32
    %23 = vector.broadcast %cst_14 : f32 to vector<16x32xf32>
    %24 = arith.mulf %23, %22 : vector<16x32xf32>
    %cst_15 = arith.constant -1.45315206 : f32
    %25 = vector.broadcast %cst_15 : f32 to vector<16x32xf32>
    %26 = arith.addf %24, %25 : vector<16x32xf32>
    %27 = arith.mulf %26, %22 : vector<16x32xf32>
    %cst_16 = arith.constant 1.42141378 : f32
    %28 = vector.broadcast %cst_16 : f32 to vector<16x32xf32>
    %29 = arith.addf %27, %28 : vector<16x32xf32>
    %30 = arith.mulf %29, %22 : vector<16x32xf32>
    %cst_17 = arith.constant -0.284496725 : f32
    %31 = vector.broadcast %cst_17 : f32 to vector<16x32xf32>
    %32 = arith.addf %30, %31 : vector<16x32xf32>
    %33 = arith.mulf %32, %22 : vector<16x32xf32>
    %cst_18 = arith.constant 0.254829586 : f32
    %34 = vector.broadcast %cst_18 : f32 to vector<16x32xf32>
    %35 = arith.addf %33, %34 : vector<16x32xf32>
    %36 = arith.mulf %35, %22 : vector<16x32xf32>
    %cst_19 = arith.constant 0.000000e+00 : f32
    %37 = vector.broadcast %cst_19 : f32 to vector<16x32xf32>
    %38 = arith.subf %37, %16 : vector<16x32xf32>
    %39 = arith.mulf %38, %16 : vector<16x32xf32>
    %40 = math.exp %39 : vector<16x32xf32>
    %41 = arith.mulf %36, %40 : vector<16x32xf32>
    %cst_20 = arith.constant 1.000000e+00 : f32
    %42 = vector.broadcast %cst_20 : f32 to vector<16x32xf32>
    %43 = arith.subf %42, %41 : vector<16x32xf32>
    %44 = arith.mulf %15, %43 : vector<16x32xf32>
    %cst_21 = arith.constant 1.000000e+00 : f32
    %45 = vector.broadcast %cst_21 : f32 to vector<16x32xf32>
    %46 = arith.addf %45, %44 : vector<16x32xf32>
    %47 = arith.mulf %8, %46 : vector<16x32xf32>
    %c0_22 = arith.constant 0 : index
    %c0_23 = arith.constant 0 : index
    %48 = vector.load %arg5[%c0_22, %c0_23] : memref<32x32xf32, #tpu.memory_space<vmem>>, vector<32x32xf32>
    %cst_24 = arith.constant dense<0.000000e+00> : vector<16x32xf32>
    %49 = tpu.matmul %47, %48, %cst_24 {dimension_numbers = #tpu.dot_dimension_numbers<[1], [0], [0], [1], [0, 0, 1, 1], [], []>} : vector<16x32xf32>, vector<32x32xf32>, vector<16x32xf32> -> vector<16x32xf32>
    %c0_25 = arith.constant 0 : index
    %c0_26 = arith.constant 0 : index
    %50 = vector.load %arg6[%c0_25, %c0_26] : memref<1x32xf32, #tpu.memory_space<vmem>>, vector<1x32xf32>
    %51 = vector.broadcast %50 : vector<1x32xf32> to vector<16x32xf32>
    %52 = arith.addf %49, %51 : vector<16x32xf32>
    %53 = vector.shape_cast %52 : vector<16x32xf32> to vector<2x8x32xf32>
    %c0_27 = arith.constant 0 : index
    %c0_28 = arith.constant 0 : index
    %c0_29 = arith.constant 0 : index
    %54 = vector.load %arg2[%c0_27, %c0_28, %c0_29] : memref<2x8x1xf32, #tpu.memory_space<vmem>>, vector<2x8x1xf32>
    %cst_30 = arith.constant 5.000000e-01 : f32
    %55 = vector.broadcast %cst_30 : f32 to vector<2x8x1xf32>
    %56 = arith.cmpf ogt, %54, %55 : vector<2x8x1xf32>
    %cst_31 = arith.constant -3.275200e+04 : f32
    %57 = vector.shape_cast %56 : vector<2x8x1xi1> to vector<2x8x1xi1>
    %58 = vector.broadcast %57 : vector<2x8x1xi1> to vector<2x8x32xi1>
    %59 = vector.broadcast %cst_31 : f32 to vector<2x8x32xf32>
    %60 = arith.select %58, %59, %53 : vector<2x8x32xi1>, vector<2x8x32xf32>
    %cst_32 = arith.constant dense<0xFF800000> : vector<2x32xf32>
    %61 = vector.multi_reduction <maximumf>, %60, %cst_32 [1] : vector<2x8x32xf32> to vector<2x32xf32>
    %62 = vector.shape_cast %61 : vector<2x32xf32> to vector<2x1x32xf32>
    %63 = vector.broadcast %62 : vector<2x1x32xf32> to vector<2x8x32xf32>
    %64 = arith.subf %60, %63 : vector<2x8x32xf32>
    %65 = math.exp %64 : vector<2x8x32xf32>
    %cst_33 = arith.constant dense<0.000000e+00> : vector<2x32xf32>
    %66 = vector.multi_reduction <add>, %65, %cst_33 [1] : vector<2x8x32xf32> to vector<2x32xf32>
    %67 = vector.shape_cast %66 : vector<2x32xf32> to vector<2x1x32xf32>
    %cst_34 = arith.constant 1.000000e+00 : f32
    %68 = vector.broadcast %cst_34 : f32 to vector<2x1x32xf32>
    %69 = arith.divf %68, %67 : vector<2x1x32xf32>
    %70 = vector.broadcast %69 : vector<2x1x32xf32> to vector<2x8x32xf32>
    %71 = arith.mulf %65, %70 : vector<2x8x32xf32>
    %72 = arith.mulf %0, %71 : vector<2x8x32xf32>
    %cst_35 = arith.constant dense<0.000000e+00> : vector<2x32xf32>
    %73 = vector.multi_reduction <add>, %72, %cst_35 [1] : vector<2x8x32xf32> to vector<2x32xf32>
    %74 = vector.shape_cast %73 : vector<2x32xf32> to vector<2x1x32xf32>
    %c0_36 = arith.constant 0 : index
    %c0_37 = arith.constant 0 : index
    %c0_38 = arith.constant 0 : index
    %75 = vector.load %arg7[%c0_36, %c0_37, %c0_38] : memref<2x1x32xf32, #tpu.memory_space<vmem>>, vector<2x1x32xf32>
    tpu.vector_store %arg7[%c0_36, %c0_37, %c0_38], %74 {strides = array<i32>} : memref<2x1x32xf32, #tpu.memory_space<vmem>>, vector<2x1x32xf32>,
    return
  }
  func.func @transform_0(%arg0: i32) -> (i32, i32, i32) {
    %c0_i32 = arith.constant 0 : i32
    %c0_i32_0 = arith.constant 0 : i32
    %c0_i32_1 = arith.constant 0 : i32
    return %arg0, %c0_i32, %c0_i32_0 : i32, i32, i32
  }
  func.func @transform_1(%arg0: i32) -> (i32, i32, i32) {
    %c0_i32 = arith.constant 0 : i32
    %c0_i32_0 = arith.constant 0 : i32
    %c0_i32_1 = arith.constant 0 : i32
    return %arg0, %c0_i32, %c0_i32_0 : i32, i32, i32
  }
  func.func @transform_2(%arg0: i32) -> (i32, i32) {
    %c0_i32 = arith.constant 0 : i32
    %c0_i32_0 = arith.constant 0 : i32
    %c0_i32_1 = arith.constant 0 : i32
    return %c0_i32, %c0_i32_0 : i32, i32
  }
  func.func @transform_3(%arg0: i32) -> (i32, i32) {
    %c0_i32 = arith.constant 0 : i32
    %c0_i32_0 = arith.constant 0 : i32
    %c0_i32_1 = arith.constant 0 : i32
    return %c0_i32, %c0_i32_0 : i32, i32
  }
  func.func @transform_4(%arg0: i32) -> (i32, i32) {
    %c0_i32 = arith.constant 0 : i32
    %c0_i32_0 = arith.constant 0 : i32
    %c0_i32_1 = arith.constant 0 : i32
    return %c0_i32, %c0_i32_0 : i32, i32
  }
  func.func @transform_5(%arg0: i32) -> (i32, i32) {
    %c0_i32 = arith.constant 0 : i32
    %c0_i32_0 = arith.constant 0 : i32
    %c0_i32_1 = arith.constant 0 : i32
    return %c0_i32, %c0_i32_0 : i32, i32
  }
  func.func @transform_6(%arg0: i32) -> (i32, i32, i32) {
    %c0_i32 = arith.constant 0 : i32
    %c0_i32_0 = arith.constant 0 : i32
    %c0_i32_1 = arith.constant 0 : i32
    return %arg0, %c0_i32, %c0_i32_0 : i32, i32, i32
  }
}

</mosaic_0001>

<llo_original>
// kernel: tpu_custom_call.1
$region0: #{tpu_custom_call.1}
  #allocation0 [shape = 'u32[]', space=smem, size = 0x4, offset = 0x4, fixed_abs, tag = 'smem constant byte address 0x4 - core index']
  #allocation1 [shape = 'u32[144,128]{1,0:T(1,128)}', space=vmem, size = 0x12000, scoped, tag = 'internal scratch']
  %s0 = inlined_call_operand.vmem [shape: f32[4,8,32], index: 0, kind: input, shape index: {}]
  %s1 = inlined_call_operand.vmem [shape: f32[4,8,1], index: 1, kind: input, shape index: {}]
  %s2 = inlined_call_operand.hbm [shape: f32[32,32], index: 2, kind: input, shape index: {}]
  %s3 = inlined_call_operand.vmem [shape: f32[1,32], index: 3, kind: input, shape index: {}]
  %s4 = inlined_call_operand.hbm [shape: f32[32,32], index: 4, kind: input, shape index: {}]
  %s5 = inlined_call_operand.vmem [shape: f32[1,32], index: 5, kind: input, shape index: {}]
  %s6 = inlined_call_operand.hbm [shape: f32[4,1,32], index: 6, kind: output, shape index: {}]
  %s7 = sld [smem:[#allocation0]]
  $region65: #{tpu_custom_call.1} parent=0
    _
  %s9 = ssub.s32 1, %s7
  %s10 = scalar_select 0, %s9, %s7
  $region1: #{tpu_custom_call.1} parent=0
    #allocation2 [shape = 'u8[16384]{0}', space=vmem, size = 0x4000, scoped, tag = 'input window, operand 2, single buffered']
    #allocation3 [shape = 's32[2]{0}', space=sflag, size = 0x8, scoped, tag = 'scoped memory for tpu_custom_call.1']
    #allocation4 [shape = 's32[2]{0}', space=sflag, size = 0x8, scoped, tag = 'scoped memory for tpu_custom_call.1']
    #allocation5 [shape = 'u8[16384]{0}', space=vmem, size = 0x4000, scoped, tag = 'input window, operand 4, single buffered']
    #allocation6 [shape = 's32[1]{0}', space=sflag, size = 0x4, scoped, tag = 'scoped memory for tpu_custom_call.1']
    #allocation7 [shape = 'u8[2048]{0}', space=vmem, size = 0x800, scoped, tag = 'output window, operand 0']
    %11 = vsyncpa [#allocation3], 0
    %12 = vsyncpa [#allocation6], 0
    %13 = vsyncpa [#allocation4], 0
    %s14 = scalar_lea.sflag [#allocation4], 1
    %15 = vsyncpa %s14, 0
    loop: start=0, step=1, limit=4
    $region2: #{tpu_custom_call.1} parent=1 // loop_pre_header
      _
    $region3: #{tpu_custom_call.1} parent=1 // loop_header
      %s17 = sphi 0, %s21
      %p18 = scmp.ge.s32.totalorder %s17, 4
      %s27 = sphi 0, %s29
      %s30 = sphi 0, %s27
      %s31 = sphi 0, %s30
      %s47 = sphi 0, %s31
      %s53 = sphi 0, %s55
      %s56 = sphi 0, %s53
      %s57 = sphi 0, %s56
      %s73 = sphi 0, %s57
      %s77 = sphi 0, %s77
      %s79 = sphi 0, %s77
      %s80 = sphi 0, %s79
      %s94 = sphi 0, %s80
      %s98 = sphi 0, %s98
      %s100 = sphi 0, %s98
      %s101 = sphi 0, %s100
      %s115 = sphi 0, %s101
      %s119 = sphi 0, %s119
      %s121 = sphi 0, %s119
      %s122 = sphi 0, %s121
      %s136 = sphi 0, %s122
      %s140 = sphi 0, %s140
      %s142 = sphi 0, %s140
      %s143 = sphi 0, %s142
      %s157 = sphi 0, %s143
      %s163 = sphi 0, %s165
      %s166 = sphi 0, %s163
      %s167 = sphi 0, %s166
      %s183 = sphi 0, %s167
    $region4: #{tpu_custom_call.1} parent=1 // loop_header_branch
      %20 = sbr.rel (%p18) target = $region8
    $region5: #{tpu_custom_call.1} parent=1 // loop_body
      %s22 = ssub.s32 %s17, 1
      %s23 = ssub.s32 %s17, 2
      %s24 = sadd.s32 %s17, 1
      %s25 = ssub.s32 %s17, %s24
      %p26 = scmp.eq.s32.totalorder %s25, 0
      %s28 = sadd.s32 %s27, 1
      %s29 = scalar_select %p26, %s27, %s28
      %p32 = pneg %p26
      %p33 = scmp.eq.s32.totalorder %s17, 1
      %p34 = por %p32, %p33
      %p35 = scmp.ne.s32.totalorder %s27, %s30
      %p36 = scmp.eq.s32.totalorder %s17, 0
      %p37 = por %p35, %p36
      %p38 = scmp.ne.s32.totalorder %s27, %s30
      %p39 = scmp.eq.s32.totalorder %s22, 1
      %p40 = por %p38, %p39
      %p41 = scmp.ne.s32.totalorder %s30, %s31
      %p42 = scmp.eq.s32.totalorder %s22, 0
      %p43 = por %p41, %p42
      %p44 = scmp.ne.s32.totalorder %s30, %s31
      %p45 = scmp.eq.s32.totalorder %s23, 1
      %p46 = por %p44, %p45
      %p48 = scmp.ne.s32.totalorder %s31, %s47
      %p49 = scmp.eq.s32.totalorder %s23, 0
      %p50 = por %p48, %p49
      %s51 = ssub.s32 %s17, %s24
      %p52 = scmp.eq.s32.totalorder %s51, 0
      %s54 = sadd.s32 %s53, 1
      %s55 = scalar_select %p52, %s53, %s54
      %p58 = pneg %p52
      %p59 = scmp.eq.s32.totalorder %s17, 1
      %p60 = por %p58, %p59
      %p61 = scmp.ne.s32.totalorder %s53, %s56
      %p62 = scmp.eq.s32.totalorder %s17, 0
      %p63 = por %p61, %p62
      %p64 = scmp.ne.s32.totalorder %s53, %s56
      %p65 = scmp.eq.s32.totalorder %s22, 1
      %p66 = por %p64, %p65
      %p67 = scmp.ne.s32.totalorder %s56, %s57
      %p68 = scmp.eq.s32.totalorder %s22, 0
      %p69 = por %p67, %p68
      %p70 = scmp.ne.s32.totalorder %s56, %s57
      %p71 = scmp.eq.s32.totalorder %s23, 1
      %p72 = por %p70, %p71
      %p74 = scmp.ne.s32.totalorder %s57, %s73
      %p75 = scmp.eq.s32.totalorder %s23, 0
      %p76 = por %p74, %p75
      %s78 = sadd.s32 %s77, 1
      %p81 = scmp.eq.s32.totalorder %s17, 1
      %p82 = scmp.ne.s32.totalorder %s77, %s79
      %p83 = scmp.eq.s32.totalorder %s17, 0
      %p84 = por %p82, %p83
      %p85 = scmp.ne.s32.totalorder %s77, %s79
      %p86 = scmp.eq.s32.totalorder %s22, 1
      %p87 = por %p85, %p86
      %p88 = scmp.ne.s32.totalorder %s79, %s80
      %p89 = scmp.eq.s32.totalorder %s22, 0
      %p90 = por %p88, %p89
      %p91 = scmp.ne.s32.totalorder %s79, %s80
      %p92 = scmp.eq.s32.totalorder %s23, 1
      %p93 = por %p91, %p92
      %p95 = scmp.ne.s32.totalorder %s80, %s94
      %p96 = scmp.eq.s32.totalorder %s23, 0
      %p97 = por %p95, %p96
      %s99 = sadd.s32 %s98, 1
      %p102 = scmp.eq.s32.totalorder %s17, 1
      %p103 = scmp.ne.s32.totalorder %s98, %s100
      %p104 = scmp.eq.s32.totalorder %s17, 0
      %p105 = por %p103, %p104
      %p106 = scmp.ne.s32.totalorder %s98, %s100
      %p107 = scmp.eq.s32.totalorder %s22, 1
      %p108 = por %p106, %p107
      %p109 = scmp.ne.s32.totalorder %s100, %s101
      %p110 = scmp.eq.s32.totalorder %s22, 0
      %p111 = por %p109, %p110
      %p112 = scmp.ne.s32.totalorder %s100, %s101
      %p113 = scmp.eq.s32.totalorder %s23, 1
      %p114 = por %p112, %p113
      %p116 = scmp.ne.s32.totalorder %s101, %s115
      %p117 = scmp.eq.s32.totalorder %s23, 0
      %p118 = por %p116, %p117
      %s120 = sadd.s32 %s119, 1
      %p123 = scmp.eq.s32.totalorder %s17, 1
      %p124 = scmp.ne.s32.totalorder %s119, %s121
      %p125 = scmp.eq.s32.totalorder %s17, 0
      %p126 = por %p124, %p125
      %p127 = scmp.ne.s32.totalorder %s119, %s121
      %p128 = scmp.eq.s32.totalorder %s22, 1
      %p129 = por %p127, %p128
      %p130 = scmp.ne.s32.totalorder %s121, %s122
      %p131 = scmp.eq.s32.totalorder %s22, 0
      %p132 = por %p130, %p131
      %p133 = scmp.ne.s32.totalorder %s121, %s122
      %p134 = scmp.eq.s32.totalorder %s23, 1
      %p135 = por %p133, %p134
      %p137 = scmp.ne.s32.totalorder %s122, %s136
      %p138 = scmp.eq.s32.totalorder %s23, 0
      %p139 = por %p137, %p138
      %s141 = sadd.s32 %s140, 1
      %p144 = scmp.eq.s32.totalorder %s17, 1
      %p145 = scmp.ne.s32.totalorder %s140, %s142
      %p146 = scmp.eq.s32.totalorder %s17, 0
      %p147 = por %p145, %p146
      %p148 = scmp.ne.s32.totalorder %s140, %s142
      %p149 = scmp.eq.s32.totalorder %s22, 1
      %p150 = por %p148, %p149
      %p151 = scmp.ne.s32.totalorder %s142, %s143
      %p152 = scmp.eq.s32.totalorder %s22, 0
      %p153 = por %p151, %p152
      %p154 = scmp.ne.s32.totalorder %s142, %s143
      %p155 = scmp.eq.s32.totalorder %s23, 1
      %p156 = por %p154, %p155
      %p158 = scmp.ne.s32.totalorder %s143, %s157
      %p159 = scmp.eq.s32.totalorder %s23, 0
      %p160 = por %p158, %p159
      %s161 = ssub.s32 %s17, %s24
      %p162 = scmp.eq.s32.totalorder %s161, 0
      %s164 = sadd.s32 %s163, 1
      %s165 = scalar_select %p162, %s163, %s164
      %p168 = pneg %p162
      %p169 = scmp.eq.s32.totalorder %s17, 1
      %p170 = por %p168, %p169
      %p171 = scmp.ne.s32.totalorder %s163, %s166
      %p172 = scmp.eq.s32.totalorder %s17, 0
      %p173 = por %p171, %p172
      %p174 = scmp.ne.s32.totalorder %s163, %s166
      %p175 = scmp.eq.s32.totalorder %s22, 1
      %p176 = por %p174, %p175
      %p177 = scmp.ne.s32.totalorder %s166, %s167
      %p178 = scmp.eq.s32.totalorder %s22, 0
      %p179 = por %p177, %p178
      %p180 = scmp.ne.s32.totalorder %s166, %s167
      %p181 = scmp.eq.s32.totalorder %s23, 1
      %p182 = por %p180, %p181
      %p184 = scmp.ne.s32.totalorder %s167, %s183
      %p185 = scmp.eq.s32.totalorder %s23, 0
      %p186 = por %p184, %p185
      %p187 = scmp.le.s32.totalorder 1, %s17
      %p188 = scmp.lt.s32.totalorder %s17, 3
      %p189 = pnand %p187, %p188
      %p190 = pneg %p189
      // Predicated region
      $region9: #{tpu_custom_call.1} parent=5 // pred_check
        _
      $region10: #{tpu_custom_call.1} parent=5 // pred_check_branch
        %192 = sbr.rel (%p189) target = $region12
      $region11: #{tpu_custom_call.1} parent=5 // pred_region
        %s193 = ssub.s32 %s17, 1
        // Predicated region
        $region13: #{tpu_custom_call.1} parent=11 // pred_check
          %p194 = pneg %p90
        $region14: #{tpu_custom_call.1} parent=11 // pred_check_branch
          %196 = sbr.rel (%p194) target = $region16
        $region15: #{tpu_custom_call.1} parent=11 // pred_region
          %s198 = ssub.s32 512, 512
          %199 = vsyncadd [#allocation3], %s198
          %s200 = sshll.u32 [#allocation2], 4
          %s201 = int_to_ptr.vmem [resolvable:$true] %s200
          %206 = dma.hbm_to_vmem [thread:$0]  %s2, 512, %s201, [#allocation3], 128, 128, 8
        $region16: #{tpu_custom_call.1} parent=11 // pred_fallthru
          _
        // Predicated region
        $region17: #{tpu_custom_call.1} parent=11 // pred_check
          %p207 = pneg %p111
        $region18: #{tpu_custom_call.1} parent=11 // pred_check_branch
          %209 = sbr.rel (%p207) target = $region20
        $region19: #{tpu_custom_call.1} parent=11 // pred_region
          _
        $region20: #{tpu_custom_call.1} parent=11 // pred_fallthru
          _
        // Predicated region
        $region21: #{tpu_custom_call.1} parent=11 // pred_check
          %p210 = pneg %p132
        $region22: #{tpu_custom_call.1} parent=11 // pred_check_branch
          %212 = sbr.rel (%p210) target = $region24
        $region23: #{tpu_custom_call.1} parent=11 // pred_region
          %s214 = ssub.s32 512, 512
          %215 = vsyncadd [#allocation6], %s214
          %s216 = sshll.u32 [#allocation5], 4
          %s217 = int_to_ptr.vmem [resolvable:$true] %s216
          %222 = dma.hbm_to_vmem [thread:$0]  %s4, 512, %s217, [#allocation6], 128, 128, 8
        $region24: #{tpu_custom_call.1} parent=11 // pred_fallthru
          _
        // Predicated region
        $region25: #{tpu_custom_call.1} parent=11 // pred_check
          %p223 = pneg %p153
        $region26: #{tpu_custom_call.1} parent=11 // pred_check_branch
          %225 = sbr.rel (%p223) target = $region28
        $region27: #{tpu_custom_call.1} parent=11 // pred_region
          _
        $region28: #{tpu_custom_call.1} parent=11 // pred_fallthru
          _
      $region12: #{tpu_custom_call.1} parent=5 // pred_fallthru
        _
      %p226 = scmp.lt.s32.totalorder %s17, 2
      // Predicated region
      $region29: #{tpu_custom_call.1} parent=5 // pred_check
        %p227 = pneg %p226
      $region30: #{tpu_custom_call.1} parent=5 // pred_check_branch
        %229 = sbr.rel (%p227) target = $region32
      $region31: #{tpu_custom_call.1} parent=5 // pred_region
        // Predicated region
        $region33: #{tpu_custom_call.1} parent=31 // pred_check
          %p230 = pneg %p37
        $region34: #{tpu_custom_call.1} parent=31 // pred_check_branch
          %232 = sbr.rel (%p230) target = $region36
        $region35: #{tpu_custom_call.1} parent=31 // pred_region
          %s233 = smul.u32 2, %s17
          %p234 = scmp.lt.s32.totalorder %s233, 3
          %s235 = scalar_select %p234, %s233, 3
          %s236 = smul.addr %s235, 8
          %s237 = scalar_lea.vmem %s0, %s236
          %s238 = smul.u32 2, %s17
        $region36: #{tpu_custom_call.1} parent=31 // pred_fallthru
          _
        // Predicated region
        $region37: #{tpu_custom_call.1} parent=31 // pred_check
          %p239 = pneg %p63
        $region38: #{tpu_custom_call.1} parent=31 // pred_check_branch
          %241 = sbr.rel (%p239) target = $region40
        $region39: #{tpu_custom_call.1} parent=31 // pred_region
          %s242 = smul.u32 2, %s17
          %p243 = scmp.lt.s32.totalorder %s242, 3
          %s244 = scalar_select %p243, %s242, 3
          %s245 = smul.addr %s244, 8
          %s246 = scalar_lea.vmem %s1, %s245
          %s247 = smul.u32 2, %s17
        $region40: #{tpu_custom_call.1} parent=31 // pred_fallthru
          _
      $region32: #{tpu_custom_call.1} parent=5 // pred_fallthru
        _
      %p248 = scmp.le.s32.totalorder 1, %s17
      %p249 = scmp.lt.s32.totalorder %s17, 3
      %p250 = pnand %p248, %p249
      %p251 = pneg %p250
      // Predicated region
      $region41: #{tpu_custom_call.1} parent=5 // pred_check
        _
      $region42: #{tpu_custom_call.1} parent=5 // pred_check_branch
        %253 = sbr.rel (%p250) target = $region44
      $region43: #{tpu_custom_call.1} parent=5 // pred_region
        %s254 = ssub.s32 %s17, 1
        // Predicated region
        $region45: #{tpu_custom_call.1} parent=43 // pred_check
          %p255 = pneg %p90
        $region46: #{tpu_custom_call.1} parent=43 // pred_check_branch
          %257 = sbr.rel (%p255) target = $region48
        $region47: #{tpu_custom_call.1} parent=43 // pred_region
          %258 = dma.done [#allocation3], 512
        $region48: #{tpu_custom_call.1} parent=43 // pred_fallthru
          _
        // Predicated region
        $region49: #{tpu_custom_call.1} parent=43 // pred_check
          %p259 = pneg %p132
        $region50: #{tpu_custom_call.1} parent=43 // pred_check_branch
          %261 = sbr.rel (%p259) target = $region52
        $region51: #{tpu_custom_call.1} parent=43 // pred_region
          %262 = dma.done [#allocation6], 512
        $region52: #{tpu_custom_call.1} parent=43 // pred_fallthru
          _
        %s263 = smul.u32 2, %s22
        %p264 = scmp.lt.s32.totalorder %s263, 3
        %s265 = scalar_select %p264, %s263, 3
        %s266 = smul.addr %s265, 8
        %s267 = scalar_lea.vmem %s0, %s266
        %p268 = pneg %p43
        %p269 = pneg %p40
        %s270 = smul.u32 2, %s22
        %p271 = scmp.lt.s32.totalorder %s270, 3
        %s272 = scalar_select %p271, %s270, 3
        %s273 = smul.addr %s272, 8
        %s274 = scalar_lea.vmem %s1, %s273
        %p275 = pneg %p69
        %p276 = pneg %p66
        %p277 = pneg %p90
        %p278 = pneg %p87
        %p279 = pneg %p111
        %p280 = pneg %p108
        %p281 = pneg %p132
        %p282 = pneg %p129
        %p283 = pneg %p153
        %p284 = pneg %p150
        %p285 = pneg %p179
        %p286 = pneg %p176
        %s287 = sand.u32 %s166, 1
        %s288 = scalar_lea.sflag [#allocation4], %s287
        %s289 = sand.u32 %s166, 1
        %s290 = smul.addr %s289, 2
        %s291 = scalar_lea.vmem [#allocation7], %s290
        %s292 = smul.u32 2, %s22
        %p293 = scmp.lt.s32.totalorder %s292, 3
        %s294 = scalar_select %p293, %s292, 3
        %s295 = smul.addr %s294, 8
        %s296 = scalar_lea.vmem %s0, %s295
        %s297 = smul.u32 2, %s22
        %s298 = smul.u32 2, %s22
        %p299 = scmp.lt.s32.totalorder %s298, 3
        %s300 = scalar_select %p299, %s298, 3
        %s301 = smul.addr %s300, 8
        %s302 = scalar_lea.vmem %s1, %s301
        %s303 = smul.u32 2, %s22
        %s304 = smul.u32 2, %s22
        %v305 = vld [vmem:[%s296] sm:$0xff]
        %v306 = vld [vmem:[%s296 + $0x8] sm:$0xff]
        %v307 = vld [vmem:[#allocation2] sm:$0xff]
        %v308 = vld [vmem:[#allocation2 + $0x8] sm:$0xff]
        %v309 = vld [vmem:[#allocation2 + $0x10] sm:$0xff]
        %v310 = vld [vmem:[#allocation2 + $0x18] sm:$0xff]
        %v311 = vld [vmem:[%s3] sm:$0x1]
        %v313 = vlaneseq
        %v314 = vshrl.u32 %v313, 7
        %v315 = vsub.s32 0, %v314
        %v316 = vrot.slane %v311, %v315
        %vm318 = vcmask 261120
        %v320 = vsel %vm318, %v305, 0
        %v323 = vsel %vm318, %v306, 0
        %325 = vmatprep.subr.mxu0 0.0
        %326 = vmatpush1.msra.mxu0 0.0
        %327 = vmatprep.subr.mxu0 0.0
        %328 = vmatpush1.msra.mxu0 0.0
        %329 = vmatprep.subr.mxu0 0.0
        %330 = vmatpush1.msra.mxu0 0.0
        %331 = vmatprep.subr.mxu0 0.0
        %332 = vmatpush1.msra.mxu0 0.0
        %333 = vmatprep.subr.mxu0 0.0
        %334 = vmatpush1.msra.mxu0 0.0
        %335 = vmatprep.subr.mxu0 0.0
        %336 = vmatpush1.msra.mxu0 0.0
        %337 = vmatprep.subr.mxu0 0.0
        %338 = vmatpush1.msra.mxu0 0.0
        %339 = vmatprep.subr.mxu0 0.0
        %340 = vmatpush1.msra.mxu0 0.0
        %341 = vmatprep.subr.mxu0 0.0
        %342 = vmatpush1.msra.mxu0 0.0
        %343 = vmatprep.subr.mxu0 0.0
        %344 = vmatpush1.msra.mxu0 0.0
        %345 = vmatprep.subr.mxu0 0.0
        %346 = vmatpush1.msra.mxu0 0.0
        %347 = vmatprep.subr.mxu0 0.0
        %348 = vmatpush1.msra.mxu0 0.0
        %349 = vmatprep.subr.mxu0 0.0
        %350 = vmatpush1.msra.mxu0 %v310
        %351 = vmatprep.subr.mxu0 0.0
        %352 = vmatpush1.msra.mxu0 %v309
        %353 = vmatprep.subr.mxu0 0.0
        %354 = vmatpush1.msra.mxu0 %v308
        %355 = vmatprep.subr.mxu0 0.0
        %356 = vmatpush1.msra.mxu0 %v307
        %357 = vmatprep.subr.mxu0 0.0
        %358 = vmatpush2.msra.mxu0 0.0
        %359 = vmatprep.subr.mxu0 0.0
        %360 = vmatpush2.msra.mxu0 0.0
        %361 = vmatprep.subr.mxu0 0.0
        %362 = vmatpush2.msra.mxu0 0.0
        %363 = vmatprep.subr.mxu0 0.0
        %364 = vmatpush2.msra.mxu0 0.0
        %365 = vmatprep.subr.mxu0 0.0
        %366 = vmatpush2.msra.mxu0 0.0
        %367 = vmatprep.subr.mxu0 0.0
        %368 = vmatpush2.msra.mxu0 0.0
        %369 = vmatprep.subr.mxu0 0.0
        %370 = vmatpush2.msra.mxu0 0.0
        %371 = vmatprep.subr.mxu0 0.0
        %372 = vmatpush2.msra.mxu0 0.0
        %373 = vmatprep.subr.mxu0 0.0
        %374 = vmatpush2.msra.mxu0 0.0
        %375 = vmatprep.subr.mxu0 0.0
        %376 = vmatpush2.msra.mxu0 0.0
        %377 = vmatprep.subr.mxu0 0.0
        %378 = vmatpush2.msra.mxu0 0.0
        %379 = vmatprep.subr.mxu0 0.0
        %380 = vmatpush2.msra.mxu0 0.0
        %381 = vmatprep.subr.mxu0 0.0
        %382 = vmatpush2.msra.mxu0 0.0
        %383 = vmatprep.subr.mxu0 0.0
        %384 = vmatpush2.msra.mxu0 0.0
        %385 = vmatprep.subr.mxu0 0.0
        %386 = vmatpush2.msra.mxu0 0.0
        %387 = vmatprep.subr.mxu0 0.0
        %388 = vmatpush2.msra.mxu0 0.0
        %389 = vmatprep.mubr.f32.mxu0 0.0
        %390 = vmatmul.mubr.f32.gmra.mxu0 %v320
        %v391 = vpop.f32.mrf.mxu0
        %v392 = vadd.f32 %v316, %v391
        %v393 = vpop.f32.mrf.mxu0
        %394 = vmatprep.mubr.f32.mxu0 0.0
        %395 = vmatmul.mubr.f32.gmra.mxu0 %v323
        %v396 = vpop.f32.mrf.mxu0
        %v397 = vadd.f32 %v316, %v396
        %v398 = vpop.f32.mrf.mxu0
        %399 = vdwg.mxu0
        %v400 = vmul.f32 %v392, 0.5
        %v401 = vmul.f32 %v397, 0.5
        %v402 = vmul.f32 %v392, 0.70710677
        %v403 = vmul.f32 %v397, 0.70710677
        %vm404 = vcmp.ge.f32.partialorder %v402, 0.0
        %vm405 = vcmp.ge.f32.partialorder %v403, 0.0
        %v406 = vsel %vm404, 1.0, -1.0
        %v407 = vsel %vm405, 1.0, -1.0
        %v408 = vand.u32 2147483647, %v402
        %v409 = vand.u32 2147483647, %v403
        %v410 = vmul.f32 %v408, 0.3275911
        %v411 = vmul.f32 %v409, 0.3275911
        %v412 = vadd.f32 %v410, 1.0
        %v413 = vadd.f32 %v411, 1.0
        %v414 = vrcp.pop %v412
        %v415 = vmul.f32 1.0, %v414
        %v416 = vrcp.pop %v413
        %v417 = vmul.f32 1.0, %v416
        %v418 = vmul.f32 %v415, 1.0614054
        %v419 = vmul.f32 %v417, 1.0614054
        %v420 = vadd.f32 %v418, -1.4531521
        %v421 = vadd.f32 %v419, -1.4531521
        %v422 = vmul.f32 %v420, %v415
        %v423 = vmul.f32 %v421, %v417
        %v424 = vadd.f32 %v422, 1.4214138
        %v425 = vadd.f32 %v423, 1.4214138
        %v426 = vmul.f32 %v424, %v415
        %v427 = vmul.f32 %v425, %v417
        %v428 = vadd.f32 %v426, -0.28449672
        %v429 = vadd.f32 %v427, -0.28449672
        %v430 = vmul.f32 %v428, %v415
        %v431 = vmul.f32 %v429, %v417
        %v432 = vadd.f32 %v430, 0.2548296
        %v433 = vadd.f32 %v431, 0.2548296
        %v434 = vmul.f32 %v432, %v415
        %v435 = vmul.f32 %v433, %v417
        %v436 = vsub.f32 0.0, %v408
        %v437 = vsub.f32 0.0, %v409
        %v438 = vmul.f32 %v436, %v408
        %v439 = vmul.f32 %v437, %v409
        %v440 = vmul.f32 %v438, 1.442695
        %v441 = vpow.pop %v440
        %v442 = vmul.f32 %v439, 1.442695
        %v443 = vpow.pop %v442
        %v444 = vmul.f32 %v434, %v441
        %v445 = vmul.f32 %v435, %v443
        %v446 = vsub.f32 1.0, %v444
        %v447 = vsub.f32 1.0, %v445
        %v448 = vmul.f32 %v406, %v446
        %v449 = vmul.f32 %v407, %v447
        %v450 = vadd.f32 %v448, 1.0
        %v451 = vadd.f32 %v449, 1.0
        %v452 = vmul.f32 %v400, %v450
        %v453 = vmul.f32 %v401, %v451
        %v454 = vld [vmem:[#allocation5] sm:$0xff]
        %v455 = vld [vmem:[#allocation5 + $0x8] sm:$0xff]
        %v456 = vld [vmem:[#allocation5 + $0x10] sm:$0xff]
        %v457 = vld [vmem:[#allocation5 + $0x18] sm:$0xff]
        %v458 = vld [vmem:[%s5] sm:$0x1]
        %v460 = vlaneseq
        %v461 = vshrl.u32 %v460, 7
        %v462 = vsub.s32 0, %v461
        %v463 = vrot.slane %v458, %v462
        %v466 = vsel %vm318, %v452, 0
        %v469 = vsel %vm318, %v453, 0
        %471 = vmatprep.subr.mxu0 0.0
        %472 = vmatpush1.msra.mxu0 0.0
        %473 = vmatprep.subr.mxu0 0.0
        %474 = vmatpush1.msra.mxu0 0.0
        %475 = vmatprep.subr.mxu0 0.0
        %476 = vmatpush1.msra.mxu0 0.0
        %477 = vmatprep.subr.mxu0 0.0
        %478 = vmatpush1.msra.mxu0 0.0
        %479 = vmatprep.subr.mxu0 0.0
        %480 = vmatpush1.msra.mxu0 0.0
        %481 = vmatprep.subr.mxu0 0.0
        %482 = vmatpush1.msra.mxu0 0.0
        %483 = vmatprep.subr.mxu0 0.0
        %484 = vmatpush1.msra.mxu0 0.0
        %485 = vmatprep.subr.mxu0 0.0
        %486 = vmatpush1.msra.mxu0 0.0
        %487 = vmatprep.subr.mxu0 0.0
        %488 = vmatpush1.msra.mxu0 0.0
        %489 = vmatprep.subr.mxu0 0.0
        %490 = vmatpush1.msra.mxu0 0.0
        %491 = vmatprep.subr.mxu0 0.0
        %492 = vmatpush1.msra.mxu0 0.0
        %493 = vmatprep.subr.mxu0 0.0
        %494 = vmatpush1.msra.mxu0 0.0
        %495 = vmatprep.subr.mxu0 0.0
        %496 = vmatpush1.msra.mxu0 %v457
        %497 = vmatprep.subr.mxu0 0.0
        %498 = vmatpush1.msra.mxu0 %v456
        %499 = vmatprep.subr.mxu0 0.0
        %500 = vmatpush1.msra.mxu0 %v455
        %501 = vmatprep.subr.mxu0 0.0
        %502 = vmatpush1.msra.mxu0 %v454
        %503 = vmatprep.subr.mxu0 0.0
        %504 = vmatpush2.msra.mxu0 0.0
        %505 = vmatprep.subr.mxu0 0.0
        %506 = vmatpush2.msra.mxu0 0.0
        %507 = vmatprep.subr.mxu0 0.0
        %508 = vmatpush2.msra.mxu0 0.0
        %509 = vmatprep.subr.mxu0 0.0
        %510 = vmatpush2.msra.mxu0 0.0
        %511 = vmatprep.subr.mxu0 0.0
        %512 = vmatpush2.msra.mxu0 0.0
        %513 = vmatprep.subr.mxu0 0.0
        %514 = vmatpush2.msra.mxu0 0.0
        %515 = vmatprep.subr.mxu0 0.0
        %516 = vmatpush2.msra.mxu0 0.0
        %517 = vmatprep.subr.mxu0 0.0
        %518 = vmatpush2.msra.mxu0 0.0
        %519 = vmatprep.subr.mxu0 0.0
        %520 = vmatpush2.msra.mxu0 0.0
        %521 = vmatprep.subr.mxu0 0.0
        %522 = vmatpush2.msra.mxu0 0.0
        %523 = vmatprep.subr.mxu0 0.0
        %524 = vmatpush2.msra.mxu0 0.0
        %525 = vmatprep.subr.mxu0 0.0
        %526 = vmatpush2.msra.mxu0 0.0
        %527 = vmatprep.subr.mxu0 0.0
        %528 = vmatpush2.msra.mxu0 0.0
        %529 = vmatprep.subr.mxu0 0.0
        %530 = vmatpush2.msra.mxu0 0.0
        %531 = vmatprep.subr.mxu0 0.0
        %532 = vmatpush2.msra.mxu0 0.0
        %533 = vmatprep.subr.mxu0 0.0
        %534 = vmatpush2.msra.mxu0 0.0
        %535 = vmatprep.mubr.f32.mxu0 0.0
        %536 = vmatmul.mubr.f32.gmra.mxu0 %v466
        %v537 = vpop.f32.mrf.mxu0
        %v538 = vadd.f32 %v463, %v537
        %v539 = vpop.f32.mrf.mxu0
        %540 = vmatprep.mubr.f32.mxu0 0.0
        %541 = vmatmul.mubr.f32.gmra.mxu0 %v469
        %v542 = vpop.f32.mrf.mxu0
        %v543 = vadd.f32 %v463, %v542
        %v544 = vpop.f32.mrf.mxu0
        %545 = vdwg.mxu0
        %v546 = vld [vmem:[%s302] sm:$0xff]
        %v547 = vld [vmem:[%s302 + $0x8] sm:$0xff]
        %vm548 = vcmp.gt.f32.partialorder %v546, 0.5
        %vm549 = vcmp.gt.f32.partialorder %v547, 0.5
        %v550 = vsel %vm548, 1, 0
        %v551 = vsel %vm549, 1, 0
        %552 = vset.pattern.permute.xlu0 0
        %553 = vperm.xlu0 %552, %v550
        %v554 = vpop.permute.xlu0 %553
        %555 = vset.pattern.permute.xlu0 0
        %556 = vperm.xlu0 %555, %v551
        %v557 = vpop.permute.xlu0 %556
        %vm558 = vcmp.eq.s32.totalorder %v554, 1
        %vm559 = vcmp.eq.s32.totalorder %v557, 1
        %v560 = vsel %vm558, -32752.0, %v538
        %v561 = vsel %vm559, -32752.0, %v543
        %v562 = vsel %vm318, %v560, -inf
        %v563 = vrot.slane %v562, 4
        %v564 = vmax.f32 %v562, %v563
        %v565 = vrot.slane %v564, 2
        %v566 = vmax.f32 %v564, %v565
        %v567 = vrot.slane %v566, 1
        %v568 = vmax.f32 %v566, %v567
        %v569 = vsel %vm318, %v561, -inf
        %v570 = vrot.slane %v569, 4
        %v571 = vmax.f32 %v569, %v570
        %v572 = vrot.slane %v571, 2
        %v573 = vmax.f32 %v571, %v572
        %v574 = vrot.slane %v573, 1
        %v575 = vmax.f32 %v573, %v574
        %v576 = vsub.f32 %v560, %v568
        %v577 = vsub.f32 %v561, %v575
        %v578 = vmul.f32 %v576, 1.442695
        %v579 = vpow.pop %v578
        %v580 = vmul.f32 %v577, 1.442695
        %v581 = vpow.pop %v580
        %v582 = vsel %vm318, %v579, 0.0
        %v583 = vrot.slane %v582, 4
        %v584 = vadd.f32 %v582, %v583
        %v585 = vrot.slane %v584, 2
        %v586 = vadd.f32 %v584, %v585
        %v587 = vrot.slane %v586, 1
        %v588 = vadd.f32 %v586, %v587
        %v589 = vsel %vm318, %v581, 0.0
        %v590 = vrot.slane %v589, 4
        %v591 = vadd.f32 %v589, %v590
        %v592 = vrot.slane %v591, 2
        %v593 = vadd.f32 %v591, %v592
        %v594 = vrot.slane %v593, 1
        %v595 = vadd.f32 %v593, %v594
        %v596 = vrcp.pop %v588
        %v597 = vmul.f32 1.0, %v596
        %v598 = vrcp.pop %v595
        %v599 = vmul.f32 1.0, %v598
        %v600 = vmul.f32 %v579, %v597
        %v601 = vmul.f32 %v581, %v599
        %v602 = vmul.f32 %v305, %v600
        %v603 = vmul.f32 %v306, %v601
        %v604 = vsel %vm318, %v602, 0.0
        %v605 = vrot.slane %v604, 4
        %v606 = vadd.f32 %v604, %v605
        %v607 = vrot.slane %v606, 2
        %v608 = vadd.f32 %v606, %v607
        %v609 = vrot.slane %v608, 1
        %v610 = vadd.f32 %v608, %v609
        %v611 = vsel %vm318, %v603, 0.0
        %v612 = vrot.slane %v611, 4
        %v613 = vadd.f32 %v611, %v612
        %v614 = vrot.slane %v613, 2
        %v615 = vadd.f32 %v613, %v614
        %v616 = vrot.slane %v615, 1
        %v617 = vadd.f32 %v615, %v616
        %vm618 = vcmask 253952
        %619 = vst.msk [vmem:[%s291] sm:$0x1] %vm618, %v610
        %620 = vst.msk [vmem:[%s291 + $0x1] sm:$0x1] %vm618, %v617
        %s621 = sand.u32 %s166, 1
        %s622 = scalar_lea.sflag [#allocation4], %s621
        %s623 = sand.u32 %s166, 1
        %s624 = smul.addr %s623, 2
        %s625 = scalar_lea.vmem [#allocation7], %s624
        // Predicated region
        $region53: #{tpu_custom_call.1} parent=43 // pred_check
          %p626 = pneg %p176
        $region54: #{tpu_custom_call.1} parent=43 // pred_check_branch
          %628 = sbr.rel (%p626) target = $region56
        $region55: #{tpu_custom_call.1} parent=43 // pred_region
          %s629 = smul.u32 2, %s22
          %s631 = ssub.s32 32, 32
          %632 = vsyncadd %s622, %s631
          %s633 = smul.addr %s629, 16
          %s634 = scalar_lea.hbm %s6, %s633
          %s635 = sshll.u32 %s625, 4
          %s636 = int_to_ptr.vmem [resolvable:$true] %s635
          %641 = dma.vmem_to_hbm [thread:$0]  %s636, 32, %s634, %s622, 16, 16, 1
        $region56: #{tpu_custom_call.1} parent=43 // pred_fallthru
          _
      $region44: #{tpu_custom_call.1} parent=5 // pred_fallthru
        _
      %p642 = scmp.le.s32.totalorder 2, %s17
      // Predicated region
      $region57: #{tpu_custom_call.1} parent=5 // pred_check
        %p643 = pneg %p642
      $region58: #{tpu_custom_call.1} parent=5 // pred_check_branch
        %645 = sbr.rel (%p643) target = $region60
      $region59: #{tpu_custom_call.1} parent=5 // pred_region
        %s646 = ssub.s32 %s17, 2
        // Predicated region
        $region61: #{tpu_custom_call.1} parent=59 // pred_check
          %p647 = pneg %p182
        $region62: #{tpu_custom_call.1} parent=59 // pred_check_branch
          %649 = sbr.rel (%p647) target = $region64
        $region63: #{tpu_custom_call.1} parent=59 // pred_region
          %s650 = sand.u32 %s167, 1
          %s651 = scalar_lea.sflag [#allocation4], %s650
          %s652 = sand.u32 %s167, 1
          %s653 = smul.addr %s652, 2
          %s654 = scalar_lea.vmem [#allocation7], %s653
          %655 = dma.done %s651, 32
        $region64: #{tpu_custom_call.1} parent=59 // pred_fallthru
          _
      $region60: #{tpu_custom_call.1} parent=5 // pred_fallthru
        _
    $region6: #{tpu_custom_call.1} parent=1 // loop_footer
      %s21 = sadd.s32 1, %s17
    $region7: #{tpu_custom_call.1} parent=1 // loop_footer_branch
      %16 = sbr.rel target = $region3
    $region8: #{tpu_custom_call.1} parent=1 // loop_exit
      _
    %656 = vsyncpa [#allocation3], 1
    %s657 = scalar_lea.sflag [#allocation3], 1
    %658 = vsyncpa %s657, 1
    %659 = vsyncpa [#allocation6], 1
    %660 = vsyncpa [#allocation4], 1
    %s661 = scalar_lea.sflag [#allocation4], 1
    %662 = vsyncpa %s661, 1

</llo_original>
